<compile_context>
chip_gen: v7x
topology: tpu7x:2x2x1
jax: 0.10.0
libtpu: 0.0.40
codegen_flags: <defaults>
</compile_context>

<pallas_src>
import jax
import jax.numpy as jnp
from jax.experimental import pallas as pl
from jax.experimental.pallas import tpu as pltpu


KH = KW = 3  # kernel_size (hardcoded; see TODO above)


def conv_bn_relu_kernel(x_ref, w_ref, scale_ref, bias_ref, o_ref):
    # x_ref:     (1, TILE_M, K)      bf16 im2col patch rows
    # w_ref:     (K, C_PAD)          bf16 conv weight reshaped to (kh*kw*cin, cout)
    # scale_ref: (1, C_PAD)          f32 fused BN scale
    # bias_ref:  (1, C_PAD)          f32 fused BN + conv bias
    # o_ref:     (1, TILE_M, C_PAD)  f32 lane-dense output slab
    acc = jnp.dot(x_ref[0], w_ref[...], preferred_element_type=jnp.float32)
    acc = acc * scale_ref[...] + bias_ref[...]   # epilogue once per tile, f32
    o_ref[0] = jnp.maximum(acc, 0.0)


def _round_up(x, m):
    return (x + m - 1) // m * m


def _choose_row_tile(H, W, cap=512):
    # Largest divisor of H whose flattened tile (rows*W) is <= cap and
    # sublane-aligned (multiple of 8), falling back to the full image.
    for tr in range(H, 0, -1):
        if H % tr:
            continue
        tm = tr * W
        if tm <= cap and (tm % 8 == 0 or tr == H):
            return tr
    return H


def conv_layer_pallas(x_nchw, w_oihw, conv_bias, gamma, beta, run_mean,
                      run_var, eps=1e-5):
    N, Cin, H, W = x_nchw.shape
    Cout = w_oihw.shape[0]
    assert w_oihw.shape == (Cout, Cin, KH, KW), "kernel hardcodes a 3x3 conv"

    C_PAD = _round_up(max(Cout, 128), 128)
    K = KH * KW * Cin
    TR = _choose_row_tile(H, W)
    TILE_M = TR * W
    n_row_tiles = H // TR

    # NCHW -> NHWC, 'same' spatial padding, im2col -> (N, H*W, K) in bf16.
    # (All of this fuses into the same jit as the pallas_call.)
    x_nhwc = jnp.transpose(x_nchw, (0, 2, 3, 1))
    x_pad = jnp.pad(x_nhwc, ((0, 0), (1, 1), (1, 1), (0, 0)))
    cols = [x_pad[:, kh:kh + H, kw:kw + W, :]
            for kh in range(KH) for kw in range(KW)]
    x_col = jnp.concatenate(cols, axis=-1).reshape(N, H * W, K)
    x_col = x_col.astype(jnp.bfloat16)
    # TODO(synk): for large Cin the HBM im2col inflates activation bytes ~9x;
    # an in-kernel haloed im2col (manual DMA) would avoid that round trip.

    # Conv weight OIHW -> (kh*kw*cin, cout), zero-padded to C_PAD lanes, bf16.
    w_col = jnp.transpose(w_oihw, (2, 3, 1, 0)).reshape(K, Cout)
    w_col = jnp.pad(w_col, ((0, 0), (0, C_PAD - Cout))).astype(jnp.bfloat16)

    # Fold conv bias + BN(eval) into per-channel affine:
    #   y = relu(conv(x) * scale + bias_fused)
    scale = gamma / jnp.sqrt(run_var + eps)
    bias_fused = (conv_bias - run_mean) * scale + beta
    scale = jnp.pad(scale, (0, C_PAD - Cout)).reshape(1, C_PAD)
    scale = scale.astype(jnp.float32)
    bias_fused = jnp.pad(bias_fused, (0, C_PAD - Cout)).reshape(1, C_PAD)
    bias_fused = bias_fused.astype(jnp.float32)

    out = pl.pallas_call(
        conv_bn_relu_kernel,
        out_shape=jax.ShapeDtypeStruct((N, H * W, C_PAD), jnp.float32),
        grid_spec=pltpu.PrefetchScalarGridSpec(
            num_scalar_prefetch=0,
            grid=(N, n_row_tiles),
            in_specs=[
                pl.BlockSpec((1, TILE_M, K), lambda n, t: (n, t, 0)),
                pl.BlockSpec((K, C_PAD), lambda n, t: (0, 0)),
                pl.BlockSpec((1, C_PAD), lambda n, t: (0, 0)),
                pl.BlockSpec((1, C_PAD), lambda n, t: (0, 0)),
            ],
            out_specs=pl.BlockSpec((1, TILE_M, C_PAD), lambda n, t: (n, t, 0)),
        ),
        compiler_params=pltpu.CompilerParams(
            dimension_semantics=("parallel", "parallel"),
            vmem_limit_bytes=32 * 1024 * 1024,
        ),
    )(x_col, w_col, scale, bias_fused)

    # Drop channel padding, restore NHWC, then NCHW (PyTorch layout).
    out = out[:, :, :Cout].reshape(N, H, W, Cout)
    return jnp.transpose(out, (0, 3, 1, 2))


def conv_layer_ref(x_nchw, w_oihw, conv_bias, gamma, beta, run_mean, run_var,
                   eps=1e-5):
    y = jax.lax.conv_general_dilated(
        x_nchw, w_oihw, window_strides=(1, 1), padding="SAME",
        dimension_numbers=("NCHW", "OIHW", "NCHW"),
    ) + conv_bias[None, :, None, None]
    y = (y - run_mean[None, :, None, None]) \
        / jnp.sqrt(run_var[None, :, None, None] + eps) \
        * gamma[None, :, None, None] + beta[None, :, None, None]
    return jnp.maximum(y, 0.0)


if __name__ == "__main__":
    key = jax.random.PRNGKey(0)
    k_x, k_w, k_b, k_g, k_be, k_m, k_v = jax.random.split(key, 7)

    N, Cin, H, W = 2, 4, 16, 16
    Cout = 8

    # PyTorch-style NCHW input and OIHW conv weight (synthetic parameters).
    x = jax.random.normal(k_x, (N, Cin, H, W), jnp.float32)
    w = jax.random.normal(k_w, (Cout, Cin, KH, KW), jnp.float32) * 0.1
    conv_bias = jax.random.normal(k_b, (Cout,), jnp.float32) * 0.1
    gamma = 1.0 + 0.1 * jax.random.normal(k_g, (Cout,), jnp.float32)
    beta = 0.1 * jax.random.normal(k_be, (Cout,), jnp.float32)
    run_mean = 0.1 * jax.random.normal(k_m, (Cout,), jnp.float32)
    run_var = jnp.abs(jax.random.normal(k_v, (Cout,), jnp.float32)) + 0.5

    fn = jax.jit(conv_layer_pallas)
    out = jax.block_until_ready(
        fn(x, w, conv_bias, gamma, beta, run_mean, run_var))

    ref = conv_layer_ref(x, w, conv_bias, gamma, beta, run_mean, run_var)
    assert out.shape == (N, Cout, H, W)
    # bf16 MXU inputs -> compare against the f32 reference with a loosened
    # tolerance (f32 accumulation keeps the error well inside this bound).
    assert jnp.allclose(out, ref, atol=5e-2, rtol=5e-2), "mismatch vs reference"

    print("KERNEL_OK")
</pallas_src>

<mosaic_0001>
module attributes {stable_mosaic.version = 11 : i64} {
  func.func @conv_bn_relu_kernel(%arg0: i32, %arg1: i32, %arg2: memref<1x256x36xbf16, #tpu.memory_space<vmem>>, %arg3: memref<36x128xbf16, #tpu.memory_space<vmem>>, %arg4: memref<1x128xf32, #tpu.memory_space<vmem>>, %arg5: memref<1x128xf32, #tpu.memory_space<vmem>>, %arg6: memref<1x256x128xf32, #tpu.memory_space<vmem>>) attributes {dimension_semantics = [#tpu.dimension_semantics<parallel>, #tpu.dimension_semantics<parallel>], iteration_bounds = array<i64: 2, 1>, scalar_prefetch = 0 : i64, scratch_operands = 0 : i64, tpu.core_type = #tpu.core_type<tc>, window_params = [{transform_indices = @transform_0, window_bounds = array<i64: 1, 256, 36>}, {pipeline_mode = #tpu.pipeline_mode<synchronous>, transform_indices = @transform_1, window_bounds = array<i64: 36, 128>}, {pipeline_mode = #tpu.pipeline_mode<synchronous>, transform_indices = @transform_2, window_bounds = array<i64: 1, 128>}, {pipeline_mode = #tpu.pipeline_mode<synchronous>, transform_indices = @transform_3, window_bounds = array<i64: 1, 128>}, {transform_indices = @transform_4, window_bounds = array<i64: 1, 256, 128>}]} {
    %c0 = arith.constant 0 : index
    %c0_0 = arith.constant 0 : index
    %c0_1 = arith.constant 0 : index
    %0 = vector.load %arg2[%c0, %c0_0, %c0_1] : memref<1x256x36xbf16, #tpu.memory_space<vmem>>, vector<1x256x36xbf16>
    %1 = vector.shape_cast %0 : vector<1x256x36xbf16> to vector<256x36xbf16>
    %c0_2 = arith.constant 0 : index
    %c0_3 = arith.constant 0 : index
    %2 = vector.load %arg3[%c0_2, %c0_3] : memref<36x128xbf16, #tpu.memory_space<vmem>>, vector<36x128xbf16>
    %cst = arith.constant dense<0.000000e+00> : vector<256x128xf32>
    %3 = tpu.matmul %1, %2, %cst {dimension_numbers = #tpu.dot_dimension_numbers<[1], [0], [0], [1], [0, 0, 1, 1], [], []>} : vector<256x36xbf16>, vector<36x128xbf16>, vector<256x128xf32> -> vector<256x128xf32>
    %c0_4 = arith.constant 0 : index
    %c0_5 = arith.constant 0 : index
    %4 = vector.load %arg4[%c0_4, %c0_5] : memref<1x128xf32, #tpu.memory_space<vmem>>, vector<1x128xf32>
    %5 = vector.broadcast %4 : vector<1x128xf32> to vector<256x128xf32>
    %6 = arith.mulf %3, %5 : vector<256x128xf32>
    %c0_6 = arith.constant 0 : index
    %c0_7 = arith.constant 0 : index
    %7 = vector.load %arg5[%c0_6, %c0_7] : memref<1x128xf32, #tpu.memory_space<vmem>>, vector<1x128xf32>
    %8 = vector.broadcast %7 : vector<1x128xf32> to vector<256x128xf32>
    %9 = arith.addf %6, %8 : vector<256x128xf32>
    %cst_8 = arith.constant 0.000000e+00 : f32
    %10 = vector.broadcast %cst_8 : f32 to vector<256x128xf32>
    %11 = arith.maximumf %9, %10 : vector<256x128xf32>
    %c0_9 = arith.constant 0 : index
    %c0_10 = arith.constant 0 : index
    %c0_11 = arith.constant 0 : index
    %12 = vector.load %arg6[%c0_9, %c0_10, %c0_11] : memref<1x256x128xf32, #tpu.memory_space<vmem>>, vector<1x256x128xf32>
    %13 = vector.shape_cast %12 : vector<1x256x128xf32> to vector<256x128xf32>
    %14 = vector.shape_cast %11 : vector<256x128xf32> to vector<1x256x128xf32>
    tpu.vector_store %arg6[%c0_9, %c0_10, %c0_11], %14 {strides = array<i32>} : memref<1x256x128xf32, #tpu.memory_space<vmem>>, vector<1x256x128xf32>,
    return
  }
  func.func @transform_0(%arg0: i32, %arg1: i32) -> (i32, i32, i32) {
    %c0_i32 = arith.constant 0 : i32
    %c0_i32_0 = arith.constant 0 : i32
    return %arg0, %arg1, %c0_i32 : i32, i32, i32
  }
  func.func @transform_1(%arg0: i32, %arg1: i32) -> (i32, i32) {
    %c0_i32 = arith.constant 0 : i32
    %c0_i32_0 = arith.constant 0 : i32
    %c0_i32_1 = arith.constant 0 : i32
    return %c0_i32, %c0_i32_0 : i32, i32
  }
  func.func @transform_2(%arg0: i32, %arg1: i32) -> (i32, i32) {
    %c0_i32 = arith.constant 0 : i32
    %c0_i32_0 = arith.constant 0 : i32
    %c0_i32_1 = arith.constant 0 : i32
    return %c0_i32, %c0_i32_0 : i32, i32
  }
  func.func @transform_3(%arg0: i32, %arg1: i32) -> (i32, i32) {
    %c0_i32 = arith.constant 0 : i32
    %c0_i32_0 = arith.constant 0 : i32
    %c0_i32_1 = arith.constant 0 : i32
    return %c0_i32, %c0_i32_0 : i32, i32
  }
  func.func @transform_4(%arg0: i32, %arg1: i32) -> (i32, i32, i32) {
    %c0_i32 = arith.constant 0 : i32
    %c0_i32_0 = arith.constant 0 : i32
    return %arg0, %arg1, %c0_i32 : i32, i32, i32
  }
}

</mosaic_0001>

<llo_original>
// kernel: conv_layer_pallas.1
$region0: #{conv_layer_pallas.1}
  #allocation0 [shape = 'u32[]', space=smem, size = 0x4, offset = 0x4, fixed_abs, tag = 'smem constant byte address 0x4 - core index']
  #allocation1 [shape = 'u32[144,128]{1,0:T(1,128)}', space=vmem, size = 0x12000, scoped, tag = 'internal scratch']
  %s0 = inlined_call_operand.vmem [shape: bf16[2,256,36], index: 0, kind: input, shape index: {}]
  %s1 = inlined_call_operand.vmem [shape: bf16[36,128], index: 1, kind: input, shape index: {}]
  %s2 = inlined_call_operand.vmem [shape: f32[1,128], index: 2, kind: input, shape index: {}]
  %s3 = inlined_call_operand.vmem [shape: f32[1,128], index: 3, kind: input, shape index: {}]
  %s4 = inlined_call_operand.vmem [shape: f32[2,256,128], index: 4, kind: output, shape index: {}]
  %s5 = sld [smem:[#allocation0]]
  $region49: #{conv_layer_pallas.1} parent=0
    _
  %s7 = ssub.s32 1, %s5
  %s8 = scalar_select 0, %s7, %s5
  loop: start=0, step=1, limit=4
  $region2: #{conv_layer_pallas.1} parent=0 // loop_pre_header
    _
  $region3: #{conv_layer_pallas.1} parent=0 // loop_header
    %s10 = sphi 0, %s14
    %p11 = scmp.ge.s32.totalorder %s10, 4
    %s17 = sphi 0, %s29
    %s18 = sphi 0, %s25
    %s19 = sphi 0, %s17
    %s20 = sphi 0, %s18
    %s21 = sphi 0, %s19
    %s22 = sphi 0, %s20
    %s34 = sphi 0, %s36
    %s37 = sphi 0, %s34
    %s38 = sphi 0, %s37
    %s54 = sphi 0, %s38
    %s58 = sphi 0, %s58
    %s60 = sphi 0, %s58
    %s61 = sphi 0, %s60
    %s75 = sphi 0, %s61
    %s79 = sphi 0, %s79
    %s81 = sphi 0, %s79
    %s82 = sphi 0, %s81
    %s96 = sphi 0, %s82
    %s100 = sphi 0, %s100
    %s102 = sphi 0, %s100
    %s103 = sphi 0, %s102
    %s117 = sphi 0, %s103
    %s125 = sphi 0, %s127
    %s128 = sphi 0, %s125
    %s129 = sphi 0, %s128
    %s145 = sphi 0, %s129
  $region4: #{conv_layer_pallas.1} parent=0 // loop_header_branch
    %13 = sbr.rel (%p11) target = $region8
  $region5: #{conv_layer_pallas.1} parent=0 // loop_body
    %s15 = ssub.s32 %s10, 1
    %s16 = ssub.s32 %s10, 2
    %s23 = sadd.s32 1, %s18
    %p24 = scmp.ge.s32.totalorder %s23, 1
    %s25 = scalar_select %p24, 0, %s23
    %s26 = sadd.s32 1, %s17
    %s27 = scalar_select %p24, %s26, %s17
    %p28 = scmp.ge.s32.totalorder %s27, 2
    %s29 = scalar_select %p28, 0, %s27
    %s30 = ssub.s32 %s17, %s29
    %s31 = ssub.s32 %s18, %s25
    %s32 = sor.u32 %s30, %s31
    %p33 = scmp.eq.s32.totalorder %s32, 0
    %s35 = sadd.s32 %s34, 1
    %s36 = scalar_select %p33, %s34, %s35
    %p39 = pneg %p33
    %p40 = scmp.eq.s32.totalorder %s10, 1
    %p41 = por %p39, %p40
    %p42 = scmp.ne.s32.totalorder %s34, %s37
    %p43 = scmp.eq.s32.totalorder %s10, 0
    %p44 = por %p42, %p43
    %p45 = scmp.ne.s32.totalorder %s34, %s37
    %p46 = scmp.eq.s32.totalorder %s15, 1
    %p47 = por %p45, %p46
    %p48 = scmp.ne.s32.totalorder %s37, %s38
    %p49 = scmp.eq.s32.totalorder %s15, 0
    %p50 = por %p48, %p49
    %p51 = scmp.ne.s32.totalorder %s37, %s38
    %p52 = scmp.eq.s32.totalorder %s16, 1
    %p53 = por %p51, %p52
    %p55 = scmp.ne.s32.totalorder %s38, %s54
    %p56 = scmp.eq.s32.totalorder %s16, 0
    %p57 = por %p55, %p56
    %s59 = sadd.s32 %s58, 1
    %p62 = scmp.eq.s32.totalorder %s10, 1
    %p63 = scmp.ne.s32.totalorder %s58, %s60
    %p64 = scmp.eq.s32.totalorder %s10, 0
    %p65 = por %p63, %p64
    %p66 = scmp.ne.s32.totalorder %s58, %s60
    %p67 = scmp.eq.s32.totalorder %s15, 1
    %p68 = por %p66, %p67
    %p69 = scmp.ne.s32.totalorder %s60, %s61
    %p70 = scmp.eq.s32.totalorder %s15, 0
    %p71 = por %p69, %p70
    %p72 = scmp.ne.s32.totalorder %s60, %s61
    %p73 = scmp.eq.s32.totalorder %s16, 1
    %p74 = por %p72, %p73
    %p76 = scmp.ne.s32.totalorder %s61, %s75
    %p77 = scmp.eq.s32.totalorder %s16, 0
    %p78 = por %p76, %p77
    %s80 = sadd.s32 %s79, 1
    %p83 = scmp.eq.s32.totalorder %s10, 1
    %p84 = scmp.ne.s32.totalorder %s79, %s81
    %p85 = scmp.eq.s32.totalorder %s10, 0
    %p86 = por %p84, %p85
    %p87 = scmp.ne.s32.totalorder %s79, %s81
    %p88 = scmp.eq.s32.totalorder %s15, 1
    %p89 = por %p87, %p88
    %p90 = scmp.ne.s32.totalorder %s81, %s82
    %p91 = scmp.eq.s32.totalorder %s15, 0
    %p92 = por %p90, %p91
    %p93 = scmp.ne.s32.totalorder %s81, %s82
    %p94 = scmp.eq.s32.totalorder %s16, 1
    %p95 = por %p93, %p94
    %p97 = scmp.ne.s32.totalorder %s82, %s96
    %p98 = scmp.eq.s32.totalorder %s16, 0
    %p99 = por %p97, %p98
    %s101 = sadd.s32 %s100, 1
    %p104 = scmp.eq.s32.totalorder %s10, 1
    %p105 = scmp.ne.s32.totalorder %s100, %s102
    %p106 = scmp.eq.s32.totalorder %s10, 0
    %p107 = por %p105, %p106
    %p108 = scmp.ne.s32.totalorder %s100, %s102
    %p109 = scmp.eq.s32.totalorder %s15, 1
    %p110 = por %p108, %p109
    %p111 = scmp.ne.s32.totalorder %s102, %s103
    %p112 = scmp.eq.s32.totalorder %s15, 0
    %p113 = por %p111, %p112
    %p114 = scmp.ne.s32.totalorder %s102, %s103
    %p115 = scmp.eq.s32.totalorder %s16, 1
    %p116 = por %p114, %p115
    %p118 = scmp.ne.s32.totalorder %s103, %s117
    %p119 = scmp.eq.s32.totalorder %s16, 0
    %p120 = por %p118, %p119
    %s121 = ssub.s32 %s17, %s29
    %s122 = ssub.s32 %s18, %s25
    %s123 = sor.u32 %s121, %s122
    %p124 = scmp.eq.s32.totalorder %s123, 0
    %s126 = sadd.s32 %s125, 1
    %s127 = scalar_select %p124, %s125, %s126
    %p130 = pneg %p124
    %p131 = scmp.eq.s32.totalorder %s10, 1
    %p132 = por %p130, %p131
    %p133 = scmp.ne.s32.totalorder %s125, %s128
    %p134 = scmp.eq.s32.totalorder %s10, 0
    %p135 = por %p133, %p134
    %p136 = scmp.ne.s32.totalorder %s125, %s128
    %p137 = scmp.eq.s32.totalorder %s15, 1
    %p138 = por %p136, %p137
    %p139 = scmp.ne.s32.totalorder %s128, %s129
    %p140 = scmp.eq.s32.totalorder %s15, 0
    %p141 = por %p139, %p140
    %p142 = scmp.ne.s32.totalorder %s128, %s129
    %p143 = scmp.eq.s32.totalorder %s16, 1
    %p144 = por %p142, %p143
    %p146 = scmp.ne.s32.totalorder %s129, %s145
    %p147 = scmp.eq.s32.totalorder %s16, 0
    %p148 = por %p146, %p147
    %p149 = scmp.le.s32.totalorder 1, %s10
    %p150 = scmp.lt.s32.totalorder %s10, 3
    %p151 = pnand %p149, %p150
    %p152 = pneg %p151
    // Predicated region
    $region9: #{conv_layer_pallas.1} parent=5 // pred_check
      _
    $region10: #{conv_layer_pallas.1} parent=5 // pred_check_branch
      %154 = sbr.rel (%p151) target = $region12
    $region11: #{conv_layer_pallas.1} parent=5 // pred_region
      %s155 = ssub.s32 %s10, 1
      // Predicated region
      $region13: #{conv_layer_pallas.1} parent=11 // pred_check
        %p156 = pneg %p71
      $region14: #{conv_layer_pallas.1} parent=11 // pred_check_branch
        %158 = sbr.rel (%p156) target = $region16
      $region15: #{conv_layer_pallas.1} parent=11 // pred_region
        _
      $region16: #{conv_layer_pallas.1} parent=11 // pred_fallthru
        _
      // Predicated region
      $region17: #{conv_layer_pallas.1} parent=11 // pred_check
        %p159 = pneg %p92
      $region18: #{conv_layer_pallas.1} parent=11 // pred_check_branch
        %161 = sbr.rel (%p159) target = $region20
      $region19: #{conv_layer_pallas.1} parent=11 // pred_region
        _
      $region20: #{conv_layer_pallas.1} parent=11 // pred_fallthru
        _
      // Predicated region
      $region21: #{conv_layer_pallas.1} parent=11 // pred_check
        %p162 = pneg %p113
      $region22: #{conv_layer_pallas.1} parent=11 // pred_check_branch
        %164 = sbr.rel (%p162) target = $region24
      $region23: #{conv_layer_pallas.1} parent=11 // pred_region
        _
      $region24: #{conv_layer_pallas.1} parent=11 // pred_fallthru
        _
    $region12: #{conv_layer_pallas.1} parent=5 // pred_fallthru
      _
    %p165 = scmp.lt.s32.totalorder %s10, 2
    // Predicated region
    $region25: #{conv_layer_pallas.1} parent=5 // pred_check
      %p166 = pneg %p165
    $region26: #{conv_layer_pallas.1} parent=5 // pred_check_branch
      %168 = sbr.rel (%p166) target = $region28
    $region27: #{conv_layer_pallas.1} parent=5 // pred_region
      // Predicated region
      $region29: #{conv_layer_pallas.1} parent=27 // pred_check
        %p169 = pneg %p44
      $region30: #{conv_layer_pallas.1} parent=27 // pred_check_branch
        %171 = sbr.rel (%p169) target = $region32
      $region31: #{conv_layer_pallas.1} parent=27 // pred_region
        %s172 = smul.u32 32, %s18
        %p173 = scmp.lt.s32.totalorder %s17, 1
        %s174 = scalar_select %p173, %s17, 1
        %p175 = scmp.lt.s32.totalorder %s172, 31
        %s176 = scalar_select %p175, %s172, 31
        %s177 = smul.addr %s174, 32
        %s178 = sadd.s32 %s176, %s177
        %s179 = smul.addr %s178, 4
        %s180 = scalar_lea.vmem %s0, %s179
        %s181 = smul.u32 32, %s18
      $region32: #{conv_layer_pallas.1} parent=27 // pred_fallthru
        _
    $region28: #{conv_layer_pallas.1} parent=5 // pred_fallthru
      _
    %p182 = scmp.le.s32.totalorder 1, %s10
    %p183 = scmp.lt.s32.totalorder %s10, 3
    %p184 = pnand %p182, %p183
    %p185 = pneg %p184
    // Predicated region
    $region33: #{conv_layer_pallas.1} parent=5 // pred_check
      _
    $region34: #{conv_layer_pallas.1} parent=5 // pred_check_branch
      %187 = sbr.rel (%p184) target = $region36
    $region35: #{conv_layer_pallas.1} parent=5 // pred_region
      %s188 = ssub.s32 %s10, 1
      %s189 = smul.u32 32, %s20
      %p190 = scmp.lt.s32.totalorder %s19, 1
      %s191 = scalar_select %p190, %s19, 1
      %p192 = scmp.lt.s32.totalorder %s189, 31
      %s193 = scalar_select %p192, %s189, 31
      %s194 = smul.addr %s191, 32
      %s195 = sadd.s32 %s193, %s194
      %s196 = smul.addr %s195, 4
      %s197 = scalar_lea.vmem %s0, %s196
      %p198 = pneg %p50
      %p199 = pneg %p47
      %p200 = pneg %p71
      %p201 = pneg %p68
      %p202 = pneg %p92
      %p203 = pneg %p89
      %p204 = pneg %p113
      %p205 = pneg %p110
      %p206 = pneg %p141
      %p207 = pneg %p138
      %s208 = smul.u32 32, %s20
      %p209 = scmp.lt.s32.totalorder %s19, 1
      %s210 = scalar_select %p209, %s19, 1
      %p211 = scmp.lt.s32.totalorder %s208, 31
      %s212 = scalar_select %p211, %s208, 31
      %s213 = smul.addr %s210, 32
      %s214 = sadd.s32 %s212, %s213
      %s215 = smul.addr %s214, 8
      %s216 = scalar_lea.vmem %s4, %s215
      %s217 = smul.u32 32, %s20
      %p218 = scmp.lt.s32.totalorder %s19, 1
      %s219 = scalar_select %p218, %s19, 1
      %p220 = scmp.lt.s32.totalorder %s217, 31
      %s221 = scalar_select %p220, %s217, 31
      %s222 = smul.addr %s219, 32
      %s223 = sadd.s32 %s221, %s222
      %s224 = smul.addr %s223, 4
      %s225 = scalar_lea.vmem %s0, %s224
      %s226 = smul.u32 32, %s20
      %s227 = smul.u32 32, %s20
      %p228 = scmp.lt.s32.totalorder %s19, 1
      %s229 = scalar_select %p228, %s19, 1
      %p230 = scmp.lt.s32.totalorder %s227, 31
      %s231 = scalar_select %p230, %s227, 31
      %s232 = smul.addr %s229, 32
      %s233 = sadd.s32 %s231, %s232
      %s234 = smul.addr %s233, 8
      %s235 = scalar_lea.vmem %s4, %s234
      %s236 = smul.u32 32, %s20
      %v238 = vld [vmem:[%s225] sm:$0xf]
      %v239 = vld [vmem:[%s225 + $0x4] sm:$0xf]
      %v240 = vld [vmem:[%s225 + $0x8] sm:$0xf]
      %v241 = vld [vmem:[%s225 + $0xc] sm:$0xf]
      %v242 = vld [vmem:[%s225 + $0x10] sm:$0xf]
      %v243 = vld [vmem:[%s225 + $0x14] sm:$0xf]
      %v244 = vld [vmem:[%s225 + $0x18] sm:$0xf]
      %v245 = vld [vmem:[%s225 + $0x1c] sm:$0xf]
      %v246 = vld [vmem:[%s225 + $0x20] sm:$0xf]
      %v247 = vld [vmem:[%s225 + $0x24] sm:$0xf]
      %v248 = vld [vmem:[%s225 + $0x28] sm:$0xf]
      %v249 = vld [vmem:[%s225 + $0x2c] sm:$0xf]
      %v250 = vld [vmem:[%s225 + $0x30] sm:$0xf]
      %v251 = vld [vmem:[%s225 + $0x34] sm:$0xf]
      %v252 = vld [vmem:[%s225 + $0x38] sm:$0xf]
      %v253 = vld [vmem:[%s225 + $0x3c] sm:$0xf]
      %v254 = vld [vmem:[%s225 + $0x40] sm:$0xf]
      %v255 = vld [vmem:[%s225 + $0x44] sm:$0xf]
      %v256 = vld [vmem:[%s225 + $0x48] sm:$0xf]
      %v257 = vld [vmem:[%s225 + $0x4c] sm:$0xf]
      %v258 = vld [vmem:[%s225 + $0x50] sm:$0xf]
      %v259 = vld [vmem:[%s225 + $0x54] sm:$0xf]
      %v260 = vld [vmem:[%s225 + $0x58] sm:$0xf]
      %v261 = vld [vmem:[%s225 + $0x5c] sm:$0xf]
      %v262 = vld [vmem:[%s225 + $0x60] sm:$0xf]
      %v263 = vld [vmem:[%s225 + $0x64] sm:$0xf]
      %v264 = vld [vmem:[%s225 + $0x68] sm:$0xf]
      %v265 = vld [vmem:[%s225 + $0x6c] sm:$0xf]
      %v266 = vld [vmem:[%s225 + $0x70] sm:$0xf]
      %v267 = vld [vmem:[%s225 + $0x74] sm:$0xf]
      %v268 = vld [vmem:[%s225 + $0x78] sm:$0xf]
      %v269 = vld [vmem:[%s225 + $0x7c] sm:$0xf]
      %v270 = vld [vmem:[%s1] sm:$0xf]
      %v271 = vld [vmem:[%s1 + $0x4] sm:$0xf]
      %v272 = vld [vmem:[%s1 + $0x8] sm:$0xf]
      %v273 = vld [vmem:[%s1 + $0xc] sm:$0xf]
      %v274 = vld [vmem:[%s1 + $0x10] sm:$0x3]
      %v307 = vunpack.c.l.b16 %v238
      %v308 = vunpack.c.l.b16 %v239
      %v309 = vunpack.c.l.b16 %v240
      %v310 = vunpack.c.l.b16 %v241
      %v311 = vunpack.c.l.b16 %v242
      %v312 = vunpack.c.l.b16 %v243
      %v313 = vunpack.c.l.b16 %v244
      %v314 = vunpack.c.l.b16 %v245
      %v315 = vunpack.c.l.b16 %v246
      %v316 = vunpack.c.l.b16 %v247
      %v317 = vunpack.c.l.b16 %v248
      %v318 = vunpack.c.l.b16 %v249
      %v319 = vunpack.c.l.b16 %v250
      %v320 = vunpack.c.l.b16 %v251
      %v321 = vunpack.c.l.b16 %v252
      %v322 = vunpack.c.l.b16 %v253
      %v323 = vunpack.c.l.b16 %v254
      %v324 = vunpack.c.l.b16 %v255
      %v325 = vunpack.c.l.b16 %v256
      %v326 = vunpack.c.l.b16 %v257
      %v327 = vunpack.c.l.b16 %v258
      %v328 = vunpack.c.l.b16 %v259
      %v329 = vunpack.c.l.b16 %v260
      %v330 = vunpack.c.l.b16 %v261
      %v331 = vunpack.c.l.b16 %v262
      %v332 = vunpack.c.l.b16 %v263
      %v333 = vunpack.c.l.b16 %v264
      %v334 = vunpack.c.l.b16 %v265
      %v335 = vunpack.c.l.b16 %v266
      %v336 = vunpack.c.l.b16 %v267
      %v337 = vunpack.c.l.b16 %v268
      %v338 = vunpack.c.l.b16 %v269
      %v339 = vpack.c.b16 %v308, %v307
      %v340 = vpack.c.b16 %v310, %v309
      %v341 = vpack.c.b16 %v312, %v311
      %v342 = vpack.c.b16 %v314, %v313
      %v343 = vpack.c.b16 %v316, %v315
      %v344 = vpack.c.b16 %v318, %v317
      %v345 = vpack.c.b16 %v320, %v319
      %v346 = vpack.c.b16 %v322, %v321
      %v347 = vpack.c.b16 %v324, %v323
      %v348 = vpack.c.b16 %v326, %v325
      %v349 = vpack.c.b16 %v328, %v327
      %v350 = vpack.c.b16 %v330, %v329
      %v351 = vpack.c.b16 %v332, %v331
      %v352 = vpack.c.b16 %v334, %v333
      %v353 = vpack.c.b16 %v336, %v335
      %v354 = vpack.c.b16 %v338, %v337
      %v360 = vunpack.c.l.b16 %v270
      %v361 = vunpack.c.l.b16 %v271
      %v362 = vunpack.c.l.b16 %v272
      %v363 = vunpack.c.l.b16 %v273
      %v364 = vunpack.c.l.b16 %v274
      %v365 = vpack.c.b16 %v361, %v360
      %v366 = vpack.c.b16 %v363, %v362
      %v367 = vpack.c.b16 %v364, %v364
      %vm370 = vcmask 293888
      %v372 = vsel %vm370, %v339, 0
      %v375 = vsel %vm370, %v340, 0
      %v378 = vsel %vm370, %v341, 0
      %v381 = vsel %vm370, %v342, 0
      %v384 = vsel %vm370, %v343, 0
      %v387 = vsel %vm370, %v344, 0
      %v390 = vsel %vm370, %v345, 0
      %v393 = vsel %vm370, %v346, 0
      %v396 = vsel %vm370, %v347, 0
      %v399 = vsel %vm370, %v348, 0
      %v402 = vsel %vm370, %v349, 0
      %v405 = vsel %vm370, %v350, 0
      %v408 = vsel %vm370, %v351, 0
      %v411 = vsel %vm370, %v352, 0
      %v414 = vsel %vm370, %v353, 0
      %v417 = vsel %vm370, %v354, 0
      %vm419 = vcmask 1041408
      %v421 = vsel %vm419, %v367, 0
      %423 = vmatprep.subr.bf16.mxu0 0
      %424 = vmatpush1.bf16.msra.mxu0 %v365
      %425 = vmatprep.subr.bf16.mxu0 0
      %426 = vmatpush1.bf16.msra.mxu0 %v366
      %427 = vmatprep.subr.bf16.mxu0 0
      %428 = vmatpush1.bf16.msra.mxu0 %v421
      %429 = vmatprep.subr.bf16.mxu0 0
      %430 = vmatpush1.bf16.msra.mxu0 0
      %431 = vmatprep.subr.bf16.mxu0 0
      %432 = vmatpush1.bf16.msra.mxu0 0
      %433 = vmatprep.subr.bf16.mxu0 0
      %434 = vmatpush1.bf16.msra.mxu0 0
      %435 = vmatprep.subr.bf16.mxu0 0
      %436 = vmatpush1.bf16.msra.mxu0 0
      %437 = vmatprep.subr.bf16.mxu0 0
      %438 = vmatpush1.bf16.msra.mxu0 0
      %439 = vmatprep.subr.bf16.mxu0 0
      %440 = vmatpush1.bf16.msra.mxu0 0
      %441 = vmatprep.subr.bf16.mxu0 0
      %442 = vmatpush1.bf16.msra.mxu0 0
      %443 = vmatprep.subr.bf16.mxu0 0
      %444 = vmatpush1.bf16.msra.mxu0 0
      %445 = vmatprep.subr.bf16.mxu0 0
      %446 = vmatpush1.bf16.msra.mxu0 0
      %447 = vmatprep.subr.bf16.mxu0 0
      %448 = vmatpush1.bf16.msra.mxu0 0
      %449 = vmatprep.subr.bf16.mxu0 0
      %450 = vmatpush1.bf16.msra.mxu0 0
      %451 = vmatprep.subr.bf16.mxu0 0
      %452 = vmatpush1.bf16.msra.mxu0 0
      %453 = vmatprep.subr.bf16.mxu0 0
      %454 = vmatpush1.bf16.msra.mxu0 0
      %455 = vmatprep.mubr.bf16.mxu0 0
      %456 = vmatmul.mubr.bf16.gmra.mrb[0].mxu0 %v372
      %v457 = vpop.f32.mrb[0].mxu0
      %v458 = vadd.f32 0.0, %v457
      %v459 = vpop.f32.mrb[0].mxu0
      %v460 = vpop.f32.mrb[0].mxu0
      %v461 = vadd.f32 0.0, %v460
      %v462 = vpop.f32.mrb[0].mxu0
      %463 = vmatprep.mubr.bf16.mxu0 0
      %464 = vmatmul.mubr.bf16.gmra.mrb[0].mxu0 %v375
      %v465 = vpop.f32.mrb[0].mxu0
      %v466 = vadd.f32 0.0, %v465
      %v467 = vpop.f32.mrb[0].mxu0
      %v468 = vpop.f32.mrb[0].mxu0
      %v469 = vadd.f32 0.0, %v468
      %v470 = vpop.f32.mrb[0].mxu0
      %471 = vmatprep.mubr.bf16.mxu0 0
      %472 = vmatmul.mubr.bf16.gmra.mrb[0].mxu0 %v378
      %v473 = vpop.f32.mrb[0].mxu0
      %v474 = vadd.f32 0.0, %v473
      %v475 = vpop.f32.mrb[0].mxu0
      %v476 = vpop.f32.mrb[0].mxu0
      %v477 = vadd.f32 0.0, %v476
      %v478 = vpop.f32.mrb[0].mxu0
      %479 = vmatprep.mubr.bf16.mxu0 0
      %480 = vmatmul.mubr.bf16.gmra.mrb[0].mxu0 %v381
      %v481 = vpop.f32.mrb[0].mxu0
      %v482 = vadd.f32 0.0, %v481
      %v483 = vpop.f32.mrb[0].mxu0
      %v484 = vpop.f32.mrb[0].mxu0
      %v485 = vadd.f32 0.0, %v484
      %v486 = vpop.f32.mrb[0].mxu0
      %487 = vmatprep.mubr.bf16.mxu0 0
      %488 = vmatmul.mubr.bf16.gmra.mrb[0].mxu0 %v384
      %v489 = vpop.f32.mrb[0].mxu0
      %v490 = vadd.f32 0.0, %v489
      %v491 = vpop.f32.mrb[0].mxu0
      %v492 = vpop.f32.mrb[0].mxu0
      %v493 = vadd.f32 0.0, %v492
      %v494 = vpop.f32.mrb[0].mxu0
      %495 = vmatprep.mubr.bf16.mxu0 0
      %496 = vmatmul.mubr.bf16.gmra.mrb[0].mxu0 %v387
      %v497 = vpop.f32.mrb[0].mxu0
      %v498 = vadd.f32 0.0, %v497
      %v499 = vpop.f32.mrb[0].mxu0
      %v500 = vpop.f32.mrb[0].mxu0
      %v501 = vadd.f32 0.0, %v500
      %v502 = vpop.f32.mrb[0].mxu0
      %503 = vmatprep.mubr.bf16.mxu0 0
      %504 = vmatmul.mubr.bf16.gmra.mrb[0].mxu0 %v390
      %v505 = vpop.f32.mrb[0].mxu0
      %v506 = vadd.f32 0.0, %v505
      %v507 = vpop.f32.mrb[0].mxu0
      %v508 = vpop.f32.mrb[0].mxu0
      %v509 = vadd.f32 0.0, %v508
      %v510 = vpop.f32.mrb[0].mxu0
      %511 = vmatprep.mubr.bf16.mxu0 0
      %512 = vmatmul.mubr.bf16.gmra.mrb[0].mxu0 %v393
      %v513 = vpop.f32.mrb[0].mxu0
      %v514 = vadd.f32 0.0, %v513
      %v515 = vpop.f32.mrb[0].mxu0
      %v516 = vpop.f32.mrb[0].mxu0
      %v517 = vadd.f32 0.0, %v516
      %v518 = vpop.f32.mrb[0].mxu0
      %519 = vmatprep.mubr.bf16.mxu0 0
      %520 = vmatmul.mubr.bf16.gmra.mrb[0].mxu0 %v396
      %v521 = vpop.f32.mrb[0].mxu0
      %v522 = vadd.f32 0.0, %v521
      %v523 = vpop.f32.mrb[0].mxu0
      %v524 = vpop.f32.mrb[0].mxu0
      %v525 = vadd.f32 0.0, %v524
      %v526 = vpop.f32.mrb[0].mxu0
      %527 = vmatprep.mubr.bf16.mxu0 0
      %528 = vmatmul.mubr.bf16.gmra.mrb[0].mxu0 %v399
      %v529 = vpop.f32.mrb[0].mxu0
      %v530 = vadd.f32 0.0, %v529
      %v531 = vpop.f32.mrb[0].mxu0
      %v532 = vpop.f32.mrb[0].mxu0
      %v533 = vadd.f32 0.0, %v532
      %v534 = vpop.f32.mrb[0].mxu0
      %535 = vmatprep.mubr.bf16.mxu0 0
      %536 = vmatmul.mubr.bf16.gmra.mrb[0].mxu0 %v402
      %v537 = vpop.f32.mrb[0].mxu0
      %v538 = vadd.f32 0.0, %v537
      %v539 = vpop.f32.mrb[0].mxu0
      %v540 = vpop.f32.mrb[0].mxu0
      %v541 = vadd.f32 0.0, %v540
      %v542 = vpop.f32.mrb[0].mxu0
      %543 = vmatprep.mubr.bf16.mxu0 0
      %544 = vmatmul.mubr.bf16.gmra.mrb[0].mxu0 %v405
      %v545 = vpop.f32.mrb[0].mxu0
      %v546 = vadd.f32 0.0, %v545
      %v547 = vpop.f32.mrb[0].mxu0
      %v548 = vpop.f32.mrb[0].mxu0
      %v549 = vadd.f32 0.0, %v548
      %v550 = vpop.f32.mrb[0].mxu0
      %551 = vmatprep.mubr.bf16.mxu0 0
      %552 = vmatmul.mubr.bf16.gmra.mrb[0].mxu0 %v408
      %v553 = vpop.f32.mrb[0].mxu0
      %v554 = vadd.f32 0.0, %v553
      %v555 = vpop.f32.mrb[0].mxu0
      %v556 = vpop.f32.mrb[0].mxu0
      %v557 = vadd.f32 0.0, %v556
      %v558 = vpop.f32.mrb[0].mxu0
      %559 = vmatprep.mubr.bf16.mxu0 0
      %560 = vmatmul.mubr.bf16.gmra.mrb[0].mxu0 %v411
      %v561 = vpop.f32.mrb[0].mxu0
      %v562 = vadd.f32 0.0, %v561
      %v563 = vpop.f32.mrb[0].mxu0
      %v564 = vpop.f32.mrb[0].mxu0
      %v565 = vadd.f32 0.0, %v564
      %v566 = vpop.f32.mrb[0].mxu0
      %567 = vmatprep.mubr.bf16.mxu0 0
      %568 = vmatmul.mubr.bf16.gmra.mrb[0].mxu0 %v414
      %v569 = vpop.f32.mrb[0].mxu0
      %v570 = vadd.f32 0.0, %v569
      %v571 = vpop.f32.mrb[0].mxu0
      %v572 = vpop.f32.mrb[0].mxu0
      %v573 = vadd.f32 0.0, %v572
      %v574 = vpop.f32.mrb[0].mxu0
      %575 = vmatprep.mubr.bf16.mxu0 0
      %576 = vmatmul.mubr.bf16.gmra.mrb[0].mxu0 %v417
      %v577 = vpop.f32.mrb[0].mxu0
      %v578 = vadd.f32 0.0, %v577
      %v579 = vpop.f32.mrb[0].mxu0
      %v580 = vpop.f32.mrb[0].mxu0
      %v581 = vadd.f32 0.0, %v580
      %v582 = vpop.f32.mrb[0].mxu0
      %583 = vdwg.mxu0
      %v584 = vld [vmem:[%s2] sm:$0x1]
      %v586 = vlaneseq
      %v587 = vshrl.u32 %v586, 7
      %v588 = vsub.s32 0, %v587
      %v589 = vrot.slane %v584, %v588
      %v591 = vmul.f32 %v458, %v589
      %v592 = vmul.f32 %v461, %v589
      %v593 = vmul.f32 %v466, %v589
      %v594 = vmul.f32 %v469, %v589
      %v595 = vmul.f32 %v474, %v589
      %v596 = vmul.f32 %v477, %v589
      %v597 = vmul.f32 %v482, %v589
      %v598 = vmul.f32 %v485, %v589
      %v599 = vmul.f32 %v490, %v589
      %v600 = vmul.f32 %v493, %v589
      %v601 = vmul.f32 %v498, %v589
      %v602 = vmul.f32 %v501, %v589
      %v603 = vmul.f32 %v506, %v589
      %v604 = vmul.f32 %v509, %v589
      %v605 = vmul.f32 %v514, %v589
      %v606 = vmul.f32 %v517, %v589
      %v607 = vmul.f32 %v522, %v589
      %v608 = vmul.f32 %v525, %v589
      %v609 = vmul.f32 %v530, %v589
      %v610 = vmul.f32 %v533, %v589
      %v611 = vmul.f32 %v538, %v589
      %v612 = vmul.f32 %v541, %v589
      %v613 = vmul.f32 %v546, %v589
      %v614 = vmul.f32 %v549, %v589
      %v615 = vmul.f32 %v554, %v589
      %v616 = vmul.f32 %v557, %v589
      %v617 = vmul.f32 %v562, %v589
      %v618 = vmul.f32 %v565, %v589
      %v619 = vmul.f32 %v570, %v589
      %v620 = vmul.f32 %v573, %v589
      %v621 = vmul.f32 %v578, %v589
      %v622 = vmul.f32 %v581, %v589
      %v623 = vld [vmem:[%s3] sm:$0x1]
      %v625 = vlaneseq
      %v626 = vshrl.u32 %v625, 7
      %v627 = vsub.s32 0, %v626
      %v628 = vrot.slane %v623, %v627
      %v630 = vadd.f32 %v591, %v628
      %v631 = vadd.f32 %v592, %v628
      %v632 = vadd.f32 %v593, %v628
      %v633 = vadd.f32 %v594, %v628
      %v634 = vadd.f32 %v595, %v628
      %v635 = vadd.f32 %v596, %v628
      %v636 = vadd.f32 %v597, %v628
      %v637 = vadd.f32 %v598, %v628
      %v638 = vadd.f32 %v599, %v628
      %v639 = vadd.f32 %v600, %v628
      %v640 = vadd.f32 %v601, %v628
      %v641 = vadd.f32 %v602, %v628
      %v642 = vadd.f32 %v603, %v628
      %v643 = vadd.f32 %v604, %v628
      %v644 = vadd.f32 %v605, %v628
      %v645 = vadd.f32 %v606, %v628
      %v646 = vadd.f32 %v607, %v628
      %v647 = vadd.f32 %v608, %v628
      %v648 = vadd.f32 %v609, %v628
      %v649 = vadd.f32 %v610, %v628
      %v650 = vadd.f32 %v611, %v628
      %v651 = vadd.f32 %v612, %v628
      %v652 = vadd.f32 %v613, %v628
      %v653 = vadd.f32 %v614, %v628
      %v654 = vadd.f32 %v615, %v628
      %v655 = vadd.f32 %v616, %v628
      %v656 = vadd.f32 %v617, %v628
      %v657 = vadd.f32 %v618, %v628
      %v658 = vadd.f32 %v619, %v628
      %v659 = vadd.f32 %v620, %v628
      %v660 = vadd.f32 %v621, %v628
      %v661 = vadd.f32 %v622, %v628
      %v662 = vmax.f32 %v630, 0.0
      %v663 = vmax.f32 %v631, 0.0
      %v664 = vmax.f32 %v632, 0.0
      %v665 = vmax.f32 %v633, 0.0
      %v666 = vmax.f32 %v634, 0.0
      %v667 = vmax.f32 %v635, 0.0
      %v668 = vmax.f32 %v636, 0.0
      %v669 = vmax.f32 %v637, 0.0
      %v670 = vmax.f32 %v638, 0.0
      %v671 = vmax.f32 %v639, 0.0
      %v672 = vmax.f32 %v640, 0.0
      %v673 = vmax.f32 %v641, 0.0
      %v674 = vmax.f32 %v642, 0.0
      %v675 = vmax.f32 %v643, 0.0
      %v676 = vmax.f32 %v644, 0.0
      %v677 = vmax.f32 %v645, 0.0
      %v678 = vmax.f32 %v646, 0.0
      %v679 = vmax.f32 %v647, 0.0
      %v680 = vmax.f32 %v648, 0.0
      %v681 = vmax.f32 %v649, 0.0
      %v682 = vmax.f32 %v650, 0.0
      %v683 = vmax.f32 %v651, 0.0
      %v684 = vmax.f32 %v652, 0.0
      %v685 = vmax.f32 %v653, 0.0
      %v686 = vmax.f32 %v654, 0.0
      %v687 = vmax.f32 %v655, 0.0
      %v688 = vmax.f32 %v656, 0.0
      %v689 = vmax.f32 %v657, 0.0
      %v690 = vmax.f32 %v658, 0.0
      %v691 = vmax.f32 %v659, 0.0
      %v692 = vmax.f32 %v660, 0.0
      %v693 = vmax.f32 %v661, 0.0
      %694 = vst [vmem:[%s235] sm:$0xff] %v662
      %695 = vst [vmem:[%s235 + $0x8] sm:$0xff] %v663
      %696 = vst [vmem:[%s235 + $0x10] sm:$0xff] %v664
      %697 = vst [vmem:[%s235 + $0x18] sm:$0xff] %v665
      %698 = vst [vmem:[%s235 + $0x20] sm:$0xff] %v666
      %699 = vst [vmem:[%s235 + $0x28] sm:$0xff] %v667
      %700 = vst [vmem:[%s235 + $0x30] sm:$0xff] %v668
      %701 = vst [vmem:[%s235 + $0x38] sm:$0xff] %v669
      %702 = vst [vmem:[%s235 + $0x40] sm:$0xff] %v670
      %703 = vst [vmem:[%s235 + $0x48] sm:$0xff] %v671
      %704 = vst [vmem:[%s235 + $0x50] sm:$0xff] %v672
      %705 = vst [vmem:[%s235 + $0x58] sm:$0xff] %v673
      %706 = vst [vmem:[%s235 + $0x60] sm:$0xff] %v674
      %707 = vst [vmem:[%s235 + $0x68] sm:$0xff] %v675
      %708 = vst [vmem:[%s235 + $0x70] sm:$0xff] %v676
      %709 = vst [vmem:[%s235 + $0x78] sm:$0xff] %v677
      %710 = vst [vmem:[%s235 + $0x80] sm:$0xff] %v678
      %711 = vst [vmem:[%s235 + $0x88] sm:$0xff] %v679
      %712 = vst [vmem:[%s235 + $0x90] sm:$0xff] %v680
      %713 = vst [vmem:[%s235 + $0x98] sm:$0xff] %v681
      %714 = vst [vmem:[%s235 + $0xa0] sm:$0xff] %v682
      %715 = vst [vmem:[%s235 + $0xa8] sm:$0xff] %v683
      %716 = vst [vmem:[%s235 + $0xb0] sm:$0xff] %v684
      %717 = vst [vmem:[%s235 + $0xb8] sm:$0xff] %v685
      %718 = vst [vmem:[%s235 + $0xc0] sm:$0xff] %v686
      %719 = vst [vmem:[%s235 + $0xc8] sm:$0xff] %v687
      %720 = vst [vmem:[%s235 + $0xd0] sm:$0xff] %v688
      %721 = vst [vmem:[%s235 + $0xd8] sm:$0xff] %v689
      %722 = vst [vmem:[%s235 + $0xe0] sm:$0xff] %v690
      %723 = vst [vmem:[%s235 + $0xe8] sm:$0xff] %v691
      %724 = vst [vmem:[%s235 + $0xf0] sm:$0xff] %v692
      %725 = vst [vmem:[%s235 + $0xf8] sm:$0xff] %v693
      %s726 = smul.u32 32, %s20
      %p727 = scmp.lt.s32.totalorder %s19, 1
      %s728 = scalar_select %p727, %s19, 1
      %p729 = scmp.lt.s32.totalorder %s726, 31
      %s730 = scalar_select %p729, %s726, 31
      %s731 = smul.addr %s728, 32
      %s732 = sadd.s32 %s730, %s731
      %s733 = smul.addr %s732, 8
      %s734 = scalar_lea.vmem %s4, %s733
      // Predicated region
      $region37: #{conv_layer_pallas.1} parent=35 // pred_check
        %p735 = pneg %p138
      $region38: #{conv_layer_pallas.1} parent=35 // pred_check_branch
        %737 = sbr.rel (%p735) target = $region40
      $region39: #{conv_layer_pallas.1} parent=35 // pred_region
        %s738 = smul.u32 32, %s20
      $region40: #{conv_layer_pallas.1} parent=35 // pred_fallthru
        _
    $region36: #{conv_layer_pallas.1} parent=5 // pred_fallthru
      _
    %p739 = scmp.le.s32.totalorder 2, %s10
    // Predicated region
    $region41: #{conv_layer_pallas.1} parent=5 // pred_check
      %p740 = pneg %p739
    $region42: #{conv_layer_pallas.1} parent=5 // pred_check_branch
      %742 = sbr.rel (%p740) target = $region44
    $region43: #{conv_layer_pallas.1} parent=5 // pred_region
      %s743 = ssub.s32 %s10, 2
      // Predicated region
      $region45: #{conv_layer_pallas.1} parent=43 // pred_check
        %p744 = pneg %p144
      $region46: #{conv_layer_pallas.1} parent=43 // pred_check_branch
        %746 = sbr.rel (%p744) target = $region48
      $region47: #{conv_layer_pallas.1} parent=43 // pred_region
        %s747 = smul.u32 32, %s22
        %p748 = scmp.lt.s32.totalorder %s21, 1
        %s749 = scalar_select %p748, %s21, 1
        %p750 = scmp.lt.s32.totalorder %s747, 31
        %s751 = scalar_select %p750, %s747, 31
        %s752 = smul.addr %s749, 32
        %s753 = sadd.s32 %s751, %s752
        %s754 = smul.addr %s753, 8
        %s755 = scalar_lea.vmem %s4, %s754
      $region48: #{conv_layer_pallas.1} parent=43 // pred_fallthru
        _
    $region44: #{conv_layer_pallas.1} parent=5 // pred_fallthru
      _
  $region6: #{conv_layer_pallas.1} parent=0 // loop_footer
    %s14 = sadd.s32 1, %s10
  $region7: #{conv_layer_pallas.1} parent=0 // loop_footer_branch
    %9 = sbr.rel target = $region3
  $region8: #{conv_layer_pallas.1} parent=0 // loop_exit
    _

</llo_original>
